<compile_context>
chip_gen: v7x
topology: tpu7x:2x2x1
jax: 0.10.0
libtpu: 0.0.40
codegen_flags: <defaults>
</compile_context>

<pallas_src>
import functools

import jax
import jax.numpy as jnp
from jax.experimental import pallas as pl
from jax.experimental.pallas import tpu as pltpu


def _round_up(x, m):
    return ((x + m - 1) // m) * m


def _lconv_kernel(*refs, K, tT, KH, P, T, time_axis, has_bias):
    """One (time-tile, lane-tile) block of the depthwise temporal conv.

    Refs (in order): taps (K, tL) f32, [bias (1, tL) f32], x main tile (tT, tL),
    [x left halo (KH, tL), x right halo (KH, tL)], out (tT, tL),
    [window scratch (2*KH + tT, tL) f32].
    Bracketed refs are present only when has_bias / K > 1.
    """
    f32 = jnp.float32
    if K > 1:
        if has_bias:
            w_ref, b_ref, xa_ref, xl_ref, xr_ref, o_ref, win_ref = refs
        else:
            w_ref, xa_ref, xl_ref, xr_ref, o_ref, win_ref = refs
            b_ref = None
    else:
        if has_bias:
            w_ref, b_ref, xa_ref, o_ref = refs
        else:
            w_ref, xa_ref, o_ref = refs
            b_ref = None

    if K == 1:
        # K == 1 implies P == 0: a pure per-lane scale, no halos / staging.
        acc = w_ref[0:1, :] * xa_ref[...].astype(f32)
    else:
        i_t = pl.program_id(time_axis)
        tL = win_ref.shape[1]

        # Stage main tile + halos into one contiguous f32 window (convert once).
        win_ref[KH:KH + tT, :] = xa_ref[...].astype(f32)
        win_ref[KH + tT:KH + tT + KH, :] = xr_ref[...].astype(f32)

        @pl.when(i_t == 0)
        def _():
            # Global left boundary: rows before t = 0 are zero padding.
            win_ref[0:KH, :] = jnp.zeros((KH, tL), f32)

        @pl.when(i_t > 0)
        def _():
            win_ref[0:KH, :] = xl_ref[...].astype(f32)

        @pl.when(i_t * tT + tT + KH > T)
        def _():
            # Global right boundary: zero every window row whose global time
            # index is >= T (covers the garbage tail of a partial last block
            # and the clamped/overrunning right halo).  Only fires on the last
            # one or two time tiles.
            zstart = T + KH - i_t * tT
            rows = jax.lax.broadcasted_iota(jnp.int32, (tT + 2 * KH, tL), 0)
            win_ref[...] = jnp.where(rows < zstart, win_ref[...], 0.0)

        # out[r] = sum_k w[k] * window[KH - P + k + r]
        base = KH - P
        acc = w_ref[0:1, :] * win_ref[base:base + tT, :]
        for k in range(1, K):
            acc = acc + w_ref[k:k + 1, :] * win_ref[base + k:base + k + tT, :]

    if has_bias:
        acc = acc + b_ref[...]
    o_ref[...] = acc.astype(o_ref.dtype)


def lightweight_conv1d_tbc(x_tbc, weight_hk, bias_c, *, padding_l, num_heads,
                           weight_softmax=False, time_tile=512, lane_tile=2048):
    """x_tbc: (T, B, C). weight_hk: (H, K). bias_c: (C,) or None. Returns (T, B, C)."""
    T, B, C = x_tbc.shape
    H, K = weight_hk.shape
    R = C // H
    assert R * H == C and H == num_heads
    P = padding_l
    assert 0 <= P <= K - 1

    L = B * C                           # lane axis
    dtype = x_tbc.dtype
    dbytes = jnp.dtype(dtype).itemsize
    has_bias = bias_c is not None

    # Per-lane taps: head c // R expanded to channels, tiled across batch.
    w = weight_hk.astype(jnp.float32)
    if weight_softmax:
        w = jax.nn.softmax(w, axis=1)
    w_lanes = jnp.tile(jnp.repeat(w.T, R, axis=1), (1, B))            # (K, B*C)
    if has_bias:
        b_lanes = jnp.tile(bias_c.reshape(1, C).astype(jnp.float32), (1, B))

    x_flat = x_tbc.reshape(T, L)        # free view of contiguous TBC; no padding copy

    # --- tile sizes -----------------------------------------------------------
    sub = max(8, 32 // dbytes)                       # packed sublanes: 8 f32 / 16 bf16 / 32 i8
    KH = max(sub, _round_up(K - 1, sub))             # halo rows (>= P and >= K-1-P)
    tT_cap = max(KH, (time_tile // KH) * KH)
    tT = min(_round_up(T, KH), tT_cap)               # multiple of KH
    if L % 128 != 0:
        tL = L                                       # full lane dim (only legal choice)
    else:
        tL = min(L, max(128, (lane_tile // 128) * 128))

    def _est_vmem(tT_, tL_):
        b = 2 * 2 * tT_ * tL_ * dbytes               # xa + out, double-buffered
        if K > 1:
            b += 2 * 2 * KH * tL_ * dbytes           # halos, double-buffered
            b += (tT_ + 2 * KH) * tL_ * 4            # f32 window scratch
        b += 2 * (K + 1) * tL_ * 4                   # taps + bias
        return b

    _BUDGET = 20 * 1024 * 1024                       # leave headroom under the 32 MiB limit
    while _est_vmem(tT, tL) > _BUDGET:
        if tT > KH:
            tT = max(KH, (tT // 2 // KH) * KH)
        elif L % 128 == 0 and tL > 128:
            tL = max(128, (tL // 2 // 128) * 128)
        else:
            break

    nT = pl.cdiv(T, tT)
    nL = pl.cdiv(L, tL)
    S = tT // KH                                     # main tile size in halo units
    nHB = pl.cdiv(T, KH)                             # number of KH-blocks covering x

    # Base index maps in (i_time, j_lane) coordinates.
    def xa_map(i, j): return (i, j)
    def xl_map(i, j): return (jnp.maximum(i * S - 1, 0), j)           # clamped at t=0
    def xr_map(i, j): return (jnp.minimum((i + 1) * S, nHB - 1), j)   # clamped at t=T
    def rep_map(i, j): return (0, j)                                  # taps / bias

    if nL > 1:
        grid = (nL, nT)        # time innermost: taps/bias DMA skipped, x/out stream along T
        time_axis = 1
        def rr(f):
            return lambda j, i: f(i, j)
    else:
        grid = (nT, nL)        # single lane tile: keep time leading
        time_axis = 0
        def rr(f):
            return f

    in_specs = [pl.BlockSpec((K, tL), rr(rep_map))]
    inputs = [w_lanes]
    if has_bias:
        in_specs.append(pl.BlockSpec((1, tL), rr(rep_map)))
        inputs.append(b_lanes)
    in_specs.append(pl.BlockSpec((tT, tL), rr(xa_map)))
    inputs.append(x_flat)
    scratch = []
    if K > 1:
        in_specs += [pl.BlockSpec((KH, tL), rr(xl_map)),
                     pl.BlockSpec((KH, tL), rr(xr_map))]
        inputs += [x_flat, x_flat]
        scratch = [pltpu.VMEM((tT + 2 * KH, tL), jnp.float32)]

    kernel = functools.partial(_lconv_kernel, K=K, tT=tT, KH=KH, P=P, T=T,
                               time_axis=time_axis, has_bias=has_bias)

    out = pl.pallas_call(
        kernel,
        out_shape=jax.ShapeDtypeStruct((T, L), dtype),
        grid=grid,
        in_specs=in_specs,
        out_specs=pl.BlockSpec((tT, tL), rr(xa_map)),
        scratch_shapes=scratch,
        compiler_params=pltpu.CompilerParams(
            dimension_semantics=("parallel", "parallel"),
            vmem_limit_bytes=32 * 1024 * 1024),
    )(*inputs)

    return out.reshape(T, B, C)


def _reference(x_tbc, weight_hk, bias_c, *, padding_l, num_heads, weight_softmax):
    """Pure-JAX reference mirroring the PyTorch _forward_expanded semantics."""
    T, B, C = x_tbc.shape
    H, K = weight_hk.shape
    R = C // H
    P = padding_l
    w = weight_hk.astype(jnp.float32)
    if weight_softmax:
        w = jax.nn.softmax(w, axis=1)
    w_full = jnp.repeat(w.T, R, axis=1)  # (K, C)
    xpad = jnp.pad(x_tbc.astype(jnp.float32), ((P, K - 1 - P), (0, 0), (0, 0)))
    out = sum(w_full[k][None, None, :] * xpad[k:k + T] for k in range(K))
    if bias_c is not None:
        out = out + bias_c.reshape(1, 1, C)
    return out.astype(x_tbc.dtype)


if __name__ == "__main__":
    key = jax.random.PRNGKey(0)

    def init_weight(k, H, K):
        # xavier_uniform on the (H, 1, K) parameter, as in reset_parameters.
        fan_in, fan_out = 1 * K, H * K
        bound = (6.0 / (fan_in + fan_out)) ** 0.5
        return jax.random.uniform(k, (H, K), jnp.float32, -bound, bound)

    # TODO(synk): weight_dropout (DropConnect) is a training-time stochastic op;
    # it is the identity in eval mode and is not implemented in the kernel.
    configs = [
        # small causal config with softmax + bias (f32)
        dict(T=16, B=2, C=64, H=8, K=3, P=2, softmax=True, bias=True,
             dtype=jnp.float32, time_tile=512, lane_tile=2048, tol=1e-5),
        # multi-tile time + lane grid, non-divisible T, non-causal padding, no bias
        dict(T=40, B=2, C=128, H=4, K=5, P=2, softmax=False, bias=False,
             dtype=jnp.float32, time_tile=16, lane_tile=128, tol=1e-5),
        # bf16 path (packed-sublane halo alignment)
        dict(T=32, B=2, C=64, H=8, K=3, P=2, softmax=True, bias=True,
             dtype=jnp.bfloat16, time_tile=512, lane_tile=2048, tol=2e-2),
    ]

    for cfg in configs:
        kx, kw, kb, key = jax.random.split(key, 4)
        weight = init_weight(kw, cfg["H"], cfg["K"])
        bias = (0.1 * jax.random.normal(kb, (cfg["C"],), jnp.float32)
                if cfg["bias"] else None)
        x = jax.random.normal(
            kx, (cfg["T"], cfg["B"], cfg["C"]), jnp.float32).astype(cfg["dtype"])

        out = lightweight_conv1d_tbc(
            x, weight, bias,
            padding_l=cfg["P"], num_heads=cfg["H"],
            weight_softmax=cfg["softmax"],
            time_tile=cfg["time_tile"], lane_tile=cfg["lane_tile"])
        out = jax.block_until_ready(out)

        ref = _reference(
            x, weight, bias,
            padding_l=cfg["P"], num_heads=cfg["H"],
            weight_softmax=cfg["softmax"])

        assert out.shape == x.shape
        assert jnp.allclose(out.astype(jnp.float32), ref.astype(jnp.float32),
                            atol=cfg["tol"], rtol=cfg["tol"]), f"mismatch: {cfg}"

    print("KERNEL_OK")
</pallas_src>

<mosaic_0001>
module attributes {stable_mosaic.version = 11 : i64} {
  func.func @_lconv_kernel(%arg0: i32, %arg1: i32, %arg2: memref<3x128xf32, #tpu.memory_space<vmem>>, %arg3: memref<1x128xf32, #tpu.memory_space<vmem>>, %arg4: memref<16x128xf32, #tpu.memory_space<vmem>>, %arg5: memref<8x128xf32, #tpu.memory_space<vmem>>, %arg6: memref<8x128xf32, #tpu.memory_space<vmem>>, %arg7: memref<16x128xf32, #tpu.memory_space<vmem>>, %arg8: memref<32x128xf32, #tpu.memory_space<vmem>>) attributes {dimension_semantics = [#tpu.dimension_semantics<parallel>, #tpu.dimension_semantics<parallel>], iteration_bounds = array<i64: 1, 1>, scalar_prefetch = 0 : i64, scratch_operands = 1 : i64, tpu.core_type = #tpu.core_type<tc>, window_params = [{transform_indices = @transform_0, window_bounds = array<i64: 3, 128>}, {transform_indices = @transform_1, window_bounds = array<i64: 1, 128>}, {transform_indices = @transform_2, window_bounds = array<i64: 16, 128>}, {transform_indices = @transform_3, window_bounds = array<i64: 8, 128>}, {transform_indices = @transform_4, window_bounds = array<i64: 8, 128>}, {transform_indices = @transform_5, window_bounds = array<i64: 16, 128>}]} {
    %c0 = arith.constant 0 : index
    %c0_0 = arith.constant 0 : index
    %0 = vector.load %arg4[%c0, %c0_0] : memref<16x128xf32, #tpu.memory_space<vmem>>, vector<16x128xf32>
    %c8 = arith.constant 8 : index
    %c0_1 = arith.constant 0 : index
    %1 = vector.load %arg8[%c8, %c0_1] : memref<32x128xf32, #tpu.memory_space<vmem>>, vector<16x128xf32>
    tpu.vector_store %arg8[%c8, %c0_1], %0 {strides = array<i32>} : memref<32x128xf32, #tpu.memory_space<vmem>>, vector<16x128xf32>,
    %c0_2 = arith.constant 0 : index
    %c0_3 = arith.constant 0 : index
    %2 = vector.load %arg6[%c0_2, %c0_3] : memref<8x128xf32, #tpu.memory_space<vmem>>, vector<8x128xf32>
    %c24 = arith.constant 24 : index
    %c0_4 = arith.constant 0 : index
    %3 = vector.load %arg8[%c24, %c0_4] : memref<32x128xf32, #tpu.memory_space<vmem>>, vector<8x128xf32>
    tpu.vector_store %arg8[%c24, %c0_4], %2 {strides = array<i32>} : memref<32x128xf32, #tpu.memory_space<vmem>>, vector<8x128xf32>,
    %c0_i32 = arith.constant 0 : i32
    %4 = arith.cmpi eq, %arg0, %c0_i32 : i32
    %5 = arith.extui %4 : i1 to i32
    %c0_i32_5 = arith.constant 0 : i32
    %6 = arith.cmpi ne, %5, %c0_i32_5 : i32
    scf.if %6 {
      %cst = arith.constant 0.000000e+00 : f32
      %34 = vector.broadcast %cst : f32 to vector<8x128xf32>
      %c0_23 = arith.constant 0 : index
      %c0_24 = arith.constant 0 : index
      %35 = vector.load %arg8[%c0_23, %c0_24] : memref<32x128xf32, #tpu.memory_space<vmem>>, vector<8x128xf32>
      tpu.vector_store %arg8[%c0_23, %c0_24], %34 {strides = array<i32>} : memref<32x128xf32, #tpu.memory_space<vmem>>, vector<8x128xf32>,
    } else {
    }
    %c0_i32_6 = arith.constant 0 : i32
    %7 = arith.cmpi sgt, %arg0, %c0_i32_6 : i32
    %8 = arith.extui %7 : i1 to i32
    %c0_i32_7 = arith.constant 0 : i32
    %9 = arith.cmpi ne, %8, %c0_i32_7 : i32
    scf.if %9 {
      %c0_23 = arith.constant 0 : index
      %c0_24 = arith.constant 0 : index
      %34 = vector.load %arg5[%c0_23, %c0_24] : memref<8x128xf32, #tpu.memory_space<vmem>>, vector<8x128xf32>
      %c0_25 = arith.constant 0 : index
      %c0_26 = arith.constant 0 : index
      %35 = vector.load %arg8[%c0_25, %c0_26] : memref<32x128xf32, #tpu.memory_space<vmem>>, vector<8x128xf32>
      tpu.vector_store %arg8[%c0_25, %c0_26], %34 {strides = array<i32>} : memref<32x128xf32, #tpu.memory_space<vmem>>, vector<8x128xf32>,
    } else {
    }
    %c16_i32 = arith.constant 16 : i32
    %10 = arith.muli %arg0, %c16_i32 : i32
    %c16_i32_8 = arith.constant 16 : i32
    %11 = arith.addi %10, %c16_i32_8 : i32
    %c8_i32 = arith.constant 8 : i32
    %12 = arith.addi %11, %c8_i32 : i32
    %c16_i32_9 = arith.constant 16 : i32
    %13 = arith.cmpi sgt, %12, %c16_i32_9 : i32
    %14 = arith.extui %13 : i1 to i32
    %c0_i32_10 = arith.constant 0 : i32
    %15 = arith.cmpi ne, %14, %c0_i32_10 : i32
    scf.if %15 {
      %c16_i32_23 = arith.constant 16 : i32
      %34 = arith.muli %arg0, %c16_i32_23 : i32
      %c24_i32 = arith.constant 24 : i32
      %35 = arith.subi %c24_i32, %34 : i32
      %36 = tpu.iota {dimensions = array<i32: 0>} : vector<32x128xi32>
      %37 = vector.broadcast %35 : i32 to vector<32x128xi32>
      %38 = arith.cmpi slt, %36, %37 : vector<32x128xi32>
      %c0_24 = arith.constant 0 : index
      %c0_25 = arith.constant 0 : index
      %39 = vector.load %arg8[%c0_24, %c0_25] : memref<32x128xf32, #tpu.memory_space<vmem>>, vector<32x128xf32>
      %cst = arith.constant 0.000000e+00 : f32
      %40 = vector.broadcast %cst : f32 to vector<32x128xf32>
      %41 = arith.select %38, %39, %40 : vector<32x128xi1>, vector<32x128xf32>
      %c0_26 = arith.constant 0 : index
      %c0_27 = arith.constant 0 : index
      %42 = vector.load %arg8[%c0_26, %c0_27] : memref<32x128xf32, #tpu.memory_space<vmem>>, vector<32x128xf32>
      tpu.vector_store %arg8[%c0_26, %c0_27], %41 {strides = array<i32>} : memref<32x128xf32, #tpu.memory_space<vmem>>, vector<32x128xf32>,
    } else {
    }
    %c0_11 = arith.constant 0 : index
    %c0_12 = arith.constant 0 : index
    %16 = vector.load %arg2[%c0_11, %c0_12] : memref<3x128xf32, #tpu.memory_space<vmem>>, vector<1x128xf32>
    %c6 = arith.constant 6 : index
    %c0_13 = arith.constant 0 : index
    %17 = vector.load %arg8[%c6, %c0_13] : memref<32x128xf32, #tpu.memory_space<vmem>>, vector<16x128xf32>
    %18 = vector.broadcast %16 : vector<1x128xf32> to vector<16x128xf32>
    %19 = arith.mulf %18, %17 : vector<16x128xf32>
    %c1 = arith.constant 1 : index
    %c0_14 = arith.constant 0 : index
    %20 = vector.load %arg2[%c1, %c0_14] : memref<3x128xf32, #tpu.memory_space<vmem>>, vector<1x128xf32>
    %c7 = arith.constant 7 : index
    %c0_15 = arith.constant 0 : index
    %21 = vector.load %arg8[%c7, %c0_15] : memref<32x128xf32, #tpu.memory_space<vmem>>, vector<16x128xf32>
    %22 = vector.broadcast %20 : vector<1x128xf32> to vector<16x128xf32>
    %23 = arith.mulf %22, %21 : vector<16x128xf32>
    %24 = arith.addf %19, %23 : vector<16x128xf32>
    %c2 = arith.constant 2 : index
    %c0_16 = arith.constant 0 : index
    %25 = vector.load %arg2[%c2, %c0_16] : memref<3x128xf32, #tpu.memory_space<vmem>>, vector<1x128xf32>
    %c8_17 = arith.constant 8 : index
    %c0_18 = arith.constant 0 : index
    %26 = vector.load %arg8[%c8_17, %c0_18] : memref<32x128xf32, #tpu.memory_space<vmem>>, vector<16x128xf32>
    %27 = vector.broadcast %25 : vector<1x128xf32> to vector<16x128xf32>
    %28 = arith.mulf %27, %26 : vector<16x128xf32>
    %29 = arith.addf %24, %28 : vector<16x128xf32>
    %c0_19 = arith.constant 0 : index
    %c0_20 = arith.constant 0 : index
    %30 = vector.load %arg3[%c0_19, %c0_20] : memref<1x128xf32, #tpu.memory_space<vmem>>, vector<1x128xf32>
    %31 = vector.broadcast %30 : vector<1x128xf32> to vector<16x128xf32>
    %32 = arith.addf %29, %31 : vector<16x128xf32>
    %c0_21 = arith.constant 0 : index
    %c0_22 = arith.constant 0 : index
    %33 = vector.load %arg7[%c0_21, %c0_22] : memref<16x128xf32, #tpu.memory_space<vmem>>, vector<16x128xf32>
    tpu.vector_store %arg7[%c0_21, %c0_22], %32 {strides = array<i32>} : memref<16x128xf32, #tpu.memory_space<vmem>>, vector<16x128xf32>,
    return
  }
  func.func @transform_0(%arg0: i32, %arg1: i32) -> (i32, i32) {
    %c0_i32 = arith.constant 0 : i32
    %c0_i32_0 = arith.constant 0 : i32
    return %c0_i32, %arg1 : i32, i32
  }
  func.func @transform_1(%arg0: i32, %arg1: i32) -> (i32, i32) {
    %c0_i32 = arith.constant 0 : i32
    %c0_i32_0 = arith.constant 0 : i32
    return %c0_i32, %arg1 : i32, i32
  }
  func.func @transform_2(%arg0: i32, %arg1: i32) -> (i32, i32) {
    %c0_i32 = arith.constant 0 : i32
    return %arg0, %arg1 : i32, i32
  }
  func.func @transform_3(%arg0: i32, %arg1: i32) -> (i32, i32) {
    %c2_i32 = arith.constant 2 : i32
    %0 = arith.muli %arg0, %c2_i32 : i32
    %c1_i32 = arith.constant 1 : i32
    %1 = arith.subi %0, %c1_i32 : i32
    %c0_i32 = arith.constant 0 : i32
    %2 = arith.maxsi %1, %c0_i32 : i32
    %c0_i32_0 = arith.constant 0 : i32
    return %2, %arg1 : i32, i32
  }
  func.func @transform_4(%arg0: i32, %arg1: i32) -> (i32, i32) {
    %c1_i32 = arith.constant 1 : i32
    %0 = arith.addi %arg0, %c1_i32 : i32
    %c2_i32 = arith.constant 2 : i32
    %1 = arith.muli %0, %c2_i32 : i32
    %c1_i32_0 = arith.constant 1 : i32
    %2 = arith.minsi %1, %c1_i32_0 : i32
    %c0_i32 = arith.constant 0 : i32
    return %2, %arg1 : i32, i32
  }
  func.func @transform_5(%arg0: i32, %arg1: i32) -> (i32, i32) {
    %c0_i32 = arith.constant 0 : i32
    return %arg0, %arg1 : i32, i32
  }
}

</mosaic_0001>

<llo_original>
// kernel: tpu_custom_call.1
$region0: #{tpu_custom_call.1}
  #allocation0 [shape = 'u32[]', space=smem, size = 0x4, offset = 0x4, fixed_abs, tag = 'smem constant byte address 0x4 - core index']
  #allocation1 [shape = 'u32[144,128]{1,0:T(1,128)}', space=vmem, size = 0x12000, scoped, tag = 'internal scratch']
  #allocation2 [shape = 'f32[32,128]{1,0:T(8,128)}', space=vmem, size = 0x4000, scoped, tag = 'scratch operand']
  %s0 = inlined_call_operand.hbm [shape: f32[3,128], index: 0, kind: input, shape index: {}]
  %s1 = inlined_call_operand.vmem [shape: f32[1,128], index: 1, kind: input, shape index: {}]
  %s2 = inlined_call_operand.hbm [shape: f32[16,128], index: 2, kind: input, shape index: {}]
  %s3 = inlined_call_operand.hbm [shape: f32[16,128], index: 3, kind: input, shape index: {}]
  %s4 = inlined_call_operand.hbm [shape: f32[16,128], index: 4, kind: input, shape index: {}]
  %s5 = inlined_call_operand.hbm [shape: f32[16,128], index: 5, kind: output, shape index: {}]
  %s6 = sld [smem:[#allocation0]]
  $region58: #{tpu_custom_call.1} parent=0
    _
  %s8 = ssub.s32 1, %s6
  %s9 = scalar_select 0, %s8, %s6
  $region1: #{tpu_custom_call.1} parent=0
    #allocation3 [shape = 'u8[2048]{0}', space=vmem, size = 0x800, scoped, tag = 'input window, operand 0, single buffered']
    #allocation4 [shape = 's32[1]{0}', space=sflag, size = 0x4, scoped, tag = 'scoped memory for tpu_custom_call.1']
    #allocation5 [shape = 's32[1]{0}', space=sflag, size = 0x4, scoped, tag = 'scoped memory for tpu_custom_call.1']
    #allocation6 [shape = 'u8[8192]{0}', space=vmem, size = 0x2000, scoped, tag = 'input window, operand 2, single buffered']
    #allocation7 [shape = 's32[1]{0}', space=sflag, size = 0x4, scoped, tag = 'scoped memory for tpu_custom_call.1']
    #allocation8 [shape = 'u8[4096]{0}', space=vmem, size = 0x1000, scoped, tag = 'input window, operand 3, single buffered']
    #allocation9 [shape = 'u8[4096]{0}', space=vmem, size = 0x1000, scoped, tag = 'input window, operand 4, single buffered']
    #allocation10 [shape = 's32[1]{0}', space=sflag, size = 0x4, scoped, tag = 'scoped memory for tpu_custom_call.1']
    #allocation11 [shape = 'u8[8192]{0}', space=vmem, size = 0x2000, scoped, tag = 'output window, operand 0, single buffered']
    %10 = vsyncpa [#allocation4], 0
    %11 = vsyncpa [#allocation7], 0
    %12 = vsyncpa [#allocation10], 0
    %13 = vsyncpa [#allocation5], 0
    // Predicated region
    $region2: #{tpu_custom_call.1} parent=1 // pred_check
      _
    $region3: #{tpu_custom_call.1} parent=1 // pred_check_branch
      %15 = sbr.rel (0) target = $region5
    $region4: #{tpu_custom_call.1} parent=1 // pred_region
      %s17 = ssub.s32 64, 64
      %18 = vsyncadd [#allocation4], %s17
      %s20 = sshll.u32 [#allocation3], 4
      %s21 = int_to_ptr.vmem [resolvable:$true] %s20
      %23 = dma.hbm_to_vmem [thread:$0]  %s0, 64, %s21, [#allocation4]
    $region5: #{tpu_custom_call.1} parent=1 // pred_fallthru
      _
    // Predicated region
    $region6: #{tpu_custom_call.1} parent=1 // pred_check
      _
    $region7: #{tpu_custom_call.1} parent=1 // pred_check_branch
      %25 = sbr.rel (0) target = $region9
    $region8: #{tpu_custom_call.1} parent=1 // pred_region
      _
    $region9: #{tpu_custom_call.1} parent=1 // pred_fallthru
      _
    // Predicated region
    $region10: #{tpu_custom_call.1} parent=1 // pred_check
      _
    $region11: #{tpu_custom_call.1} parent=1 // pred_check_branch
      %27 = sbr.rel (0) target = $region13
    $region12: #{tpu_custom_call.1} parent=1 // pred_region
      %s29 = ssub.s32 256, 256
      %30 = vsyncadd [#allocation7], %s29
      %s31 = sshll.u32 [#allocation6], 4
      %s32 = int_to_ptr.vmem [resolvable:$true] %s31
      %37 = dma.hbm_to_vmem [thread:$0]  %s2, 256, %s32, [#allocation7], 128, 128, 8
    $region13: #{tpu_custom_call.1} parent=1 // pred_fallthru
      _
    // Predicated region
    $region14: #{tpu_custom_call.1} parent=1 // pred_check
      _
    $region15: #{tpu_custom_call.1} parent=1 // pred_check_branch
      %39 = sbr.rel (0) target = $region17
    $region16: #{tpu_custom_call.1} parent=1 // pred_region
      %s40 = smul.u32 0, 2
      %s41 = ssub.s32 %s40, 1
      %p42 = scmp.gt.s32.totalorder %s41, 0
      %s43 = scalar_select %p42, %s41, 0
      %s45 = ssub.s32 128, 128
      %46 = vsyncadd [#allocation7], %s45
      %s47 = smul.addr %s43, 128
      %s48 = scalar_lea.hbm %s3, %s47
      %s50 = sshll.u32 [#allocation8], 4
      %s51 = int_to_ptr.vmem [resolvable:$true] %s50
      %53 = dma.hbm_to_vmem [thread:$0]  %s48, 128, %s51, [#allocation7]
    $region17: #{tpu_custom_call.1} parent=1 // pred_fallthru
      _
    // Predicated region
    $region18: #{tpu_custom_call.1} parent=1 // pred_check
      _
    $region19: #{tpu_custom_call.1} parent=1 // pred_check_branch
      %55 = sbr.rel (0) target = $region21
    $region20: #{tpu_custom_call.1} parent=1 // pred_region
      %s56 = sadd.s32 0, 1
      %s57 = smul.u32 %s56, 2
      %p58 = scmp.lt.s32.totalorder %s57, 1
      %s59 = scalar_select %p58, %s57, 1
      %s61 = ssub.s32 128, 128
      %62 = vsyncadd [#allocation10], %s61
      %s63 = smul.addr %s59, 128
      %s64 = scalar_lea.hbm %s4, %s63
      %s66 = sshll.u32 [#allocation9], 4
      %s67 = int_to_ptr.vmem [resolvable:$true] %s66
      %69 = dma.hbm_to_vmem [thread:$0]  %s64, 128, %s67, [#allocation10]
    $region21: #{tpu_custom_call.1} parent=1 // pred_fallthru
      _
    // Predicated region
    $region22: #{tpu_custom_call.1} parent=1 // pred_check
      _
    $region23: #{tpu_custom_call.1} parent=1 // pred_check_branch
      %71 = sbr.rel (0) target = $region25
    $region24: #{tpu_custom_call.1} parent=1 // pred_region
      %72 = dma.done [#allocation4], 64
    $region25: #{tpu_custom_call.1} parent=1 // pred_fallthru
      _
    // Predicated region
    $region26: #{tpu_custom_call.1} parent=1 // pred_check
      _
    $region27: #{tpu_custom_call.1} parent=1 // pred_check_branch
      %74 = sbr.rel (0) target = $region29
    $region28: #{tpu_custom_call.1} parent=1 // pred_region
      %75 = dma.done [#allocation7], 256
    $region29: #{tpu_custom_call.1} parent=1 // pred_fallthru
      _
    // Predicated region
    $region30: #{tpu_custom_call.1} parent=1 // pred_check
      _
    $region31: #{tpu_custom_call.1} parent=1 // pred_check_branch
      %77 = sbr.rel (0) target = $region33
    $region32: #{tpu_custom_call.1} parent=1 // pred_region
      %78 = dma.done [#allocation7], 128
    $region33: #{tpu_custom_call.1} parent=1 // pred_fallthru
      _
    // Predicated region
    $region34: #{tpu_custom_call.1} parent=1 // pred_check
      _
    $region35: #{tpu_custom_call.1} parent=1 // pred_check_branch
      %80 = sbr.rel (0) target = $region37
    $region36: #{tpu_custom_call.1} parent=1 // pred_region
      %81 = dma.done [#allocation10], 128
    $region37: #{tpu_custom_call.1} parent=1 // pred_fallthru
      _
    %s82 = smul.u32 0, 2
    %s83 = ssub.s32 %s82, 1
    %p84 = scmp.gt.s32.totalorder %s83, 0
    %s85 = scalar_select %p84, %s83, 0
    %s86 = sadd.s32 0, 1
    %s87 = smul.u32 %s86, 2
    %p88 = scmp.lt.s32.totalorder %s87, 1
    %s89 = scalar_select %p88, %s87, 1
    %v90 = vld [vmem:[#allocation6] sm:$0xff]
    %v91 = vld [vmem:[#allocation6 + $0x8] sm:$0xff]
    %92 = vst [vmem:[#allocation2 + $0x8] sm:$0xff] %v90
    %93 = vst [vmem:[#allocation2 + $0x10] sm:$0xff] %v91
    %v94 = vld [vmem:[#allocation9] sm:$0xff]
    %95 = vst [vmem:[#allocation2 + $0x18] sm:$0xff] %v94
    %p96 = scmp.eq.s32.totalorder 0, 0
    // Predicated region
    $region38: #{tpu_custom_call.1} parent=1 // pred_check
      %p97 = pneg %p96
    $region39: #{tpu_custom_call.1} parent=1 // pred_check_branch
      %99 = sbr.rel (%p97) target = $region41
    $region40: #{tpu_custom_call.1} parent=1 // pred_region
      %100 = vst [vmem:[#allocation2] sm:$0xff] 0.0
    $region41: #{tpu_custom_call.1} parent=1 // pred_fallthru
      _
    %p101 = scmp.gt.s32.totalorder 0, 0
    // Predicated region
    $region42: #{tpu_custom_call.1} parent=1 // pred_check
      %p102 = pneg %p101
    $region43: #{tpu_custom_call.1} parent=1 // pred_check_branch
      %104 = sbr.rel (%p102) target = $region45
    $region44: #{tpu_custom_call.1} parent=1 // pred_region
      %v105 = vld [vmem:[#allocation8] sm:$0xff]
      %106 = vst [vmem:[#allocation2] sm:$0xff] %v105
    $region45: #{tpu_custom_call.1} parent=1 // pred_fallthru
      _
    %s107 = smul.u32 0, 16
    %s108 = sadd.s32 %s107, 24
    %p109 = scmp.gt.s32.totalorder %s108, 16
    // Predicated region
    $region46: #{tpu_custom_call.1} parent=1 // pred_check
      %p110 = pneg %p109
    $region47: #{tpu_custom_call.1} parent=1 // pred_check_branch
      %112 = sbr.rel (%p110) target = $region49
    $region48: #{tpu_custom_call.1} parent=1 // pred_region
      %s113 = ssub.s32 24, %s107
      %v114 = vlaneseq
      %v115 = vshrl.u32 %v114, 7
      %v116 = vadd.s32 %v115, 8
      %v117 = vadd.s32 %v115, 16
      %v118 = vadd.s32 %v115, 24
      %v119 = vstv %s113
      %vm120 = vcmp.lt.s32.totalorder %v115, %v119
      %vm121 = vcmp.lt.s32.totalorder %v116, %v119
      %vm122 = vcmp.lt.s32.totalorder %v117, %v119
      %vm123 = vcmp.lt.s32.totalorder %v118, %v119
      %v124 = vld [vmem:[#allocation2] sm:$0xff]
      %v125 = vld [vmem:[#allocation2 + $0x8] sm:$0xff]
      %v126 = vld [vmem:[#allocation2 + $0x10] sm:$0xff]
      %v127 = vld [vmem:[#allocation2 + $0x18] sm:$0xff]
      %v128 = vsel %vm120, %v124, 0.0
      %v129 = vsel %vm121, %v125, 0.0
      %v130 = vsel %vm122, %v126, 0.0
      %v131 = vsel %vm123, %v127, 0.0
      %132 = vst [vmem:[#allocation2] sm:$0xff] %v128
      %133 = vst [vmem:[#allocation2 + $0x8] sm:$0xff] %v129
      %134 = vst [vmem:[#allocation2 + $0x10] sm:$0xff] %v130
      %135 = vst [vmem:[#allocation2 + $0x18] sm:$0xff] %v131
    $region49: #{tpu_custom_call.1} parent=1 // pred_fallthru
      _
    %v136 = vld [vmem:[#allocation3] sm:$0x1]
    %v137 = vld [vmem:[#allocation2 + $0x6] sm:$0xff]
    %v138 = vld [vmem:[#allocation2 + $0xe] sm:$0xff]
    %v139 = vlaneseq
    %v140 = vshrl.u32 %v139, 7
    %v141 = vsub.s32 0, %v140
    %v142 = vrot.slane %v136, %v141
    %v143 = vmul.f32 %v142, %v137
    %v144 = vmul.f32 %v142, %v138
    %v145 = vld [vmem:[#allocation3 + $0x1] sm:$0x1]
    %v146 = vld [vmem:[#allocation2 + $0x7] sm:$0xff]
    %v147 = vld [vmem:[#allocation2 + $0xf] sm:$0xff]
    %v148 = vlaneseq
    %v149 = vshrl.u32 %v148, 7
    %v150 = vsub.s32 0, %v149
    %v151 = vrot.slane %v145, %v150
    %v152 = vmul.f32 %v151, %v146
    %v153 = vmul.f32 %v151, %v147
    %v154 = vadd.f32 %v143, %v152
    %v155 = vadd.f32 %v144, %v153
    %v156 = vld [vmem:[#allocation3 + $0x2] sm:$0x1]
    %v157 = vld [vmem:[#allocation2 + $0x8] sm:$0xff]
    %v158 = vld [vmem:[#allocation2 + $0x10] sm:$0xff]
    %v159 = vlaneseq
    %v160 = vshrl.u32 %v159, 7
    %v161 = vsub.s32 0, %v160
    %v162 = vrot.slane %v156, %v161
    %v163 = vmul.f32 %v162, %v157
    %v164 = vmul.f32 %v162, %v158
    %v165 = vadd.f32 %v154, %v163
    %v166 = vadd.f32 %v155, %v164
    %v167 = vld [vmem:[%s1] sm:$0x1]
    %v169 = vlaneseq
    %v170 = vshrl.u32 %v169, 7
    %v171 = vsub.s32 0, %v170
    %v172 = vrot.slane %v167, %v171
    %v174 = vadd.f32 %v165, %v172
    %v175 = vadd.f32 %v166, %v172
    %176 = vst [vmem:[#allocation11] sm:$0xff] %v174
    %177 = vst [vmem:[#allocation11 + $0x8] sm:$0xff] %v175
    // Predicated region
    $region50: #{tpu_custom_call.1} parent=1 // pred_check
      _
    $region51: #{tpu_custom_call.1} parent=1 // pred_check_branch
      %179 = sbr.rel (0) target = $region53
    $region52: #{tpu_custom_call.1} parent=1 // pred_region
      %s181 = ssub.s32 256, 256
      %182 = vsyncadd [#allocation5], %s181
      %s183 = sshll.u32 [#allocation11], 4
      %s184 = int_to_ptr.vmem [resolvable:$true] %s183
      %189 = dma.vmem_to_hbm [thread:$0]  %s184, 256, %s5, [#allocation5], 128, 128, 8
    $region53: #{tpu_custom_call.1} parent=1 // pred_fallthru
      _
    // Predicated region
    $region54: #{tpu_custom_call.1} parent=1 // pred_check
      _
    $region55: #{tpu_custom_call.1} parent=1 // pred_check_branch
      %191 = sbr.rel (0) target = $region57
    $region56: #{tpu_custom_call.1} parent=1 // pred_region
      %192 = dma.done [#allocation5], 256
    $region57: #{tpu_custom_call.1} parent=1 // pred_fallthru
      _
    %193 = vsyncpa [#allocation4], 1
    %194 = vsyncpa [#allocation7], 1
    %195 = vsyncpa [#allocation10], 1
    %196 = vsyncpa [#allocation5], 1

</llo_original>
